<compile_context>
chip_gen: v7x
topology: tpu7x:2x2x1
jax: 0.10.0
libtpu: 0.0.40
codegen_flags: <defaults>
</compile_context>

<pallas_src>
import functools

import jax
import jax.numpy as jnp
from jax.experimental import pallas as pl
from jax.experimental.pallas import tpu as pltpu

# ---------------- configuration (small synthetic sizes) ----------------
B = 256         # batch (tiled over the grid; any B works, padded to the block)
D = 16          # input feature dim fed to every base model
M = 3           # number of base models (len(m1_list))
C = 2           # num_classes (the C==2 sigmoid/softmax folding requires this)
H = 32          # hidden_list = [32] for the stacking DNN
X_SIZE = M * C  # x_size of the meta classifier

LANES = 128     # lane width of the packed weight slab
C_PAD = 128     # lane-dense padded output width (real logits live in [:, :C])


def _round_up(n, m):
    return (n + m - 1) // m * m


# ----- packed weight-slab layout: each block starts on a sublane (8-row) boundary
ROW_WD = 0                                  # rows [ROW_WD, ROW_WD+D),  cols [0, M)
ROW_BD = _round_up(ROW_WD + D, 8)           # row  ROW_BD,              cols [0, M)
ROW_W1 = _round_up(ROW_BD + 1, 8)           # rows [ROW_W1, ROW_W1+M),  cols [0, H)
ROW_B1 = _round_up(ROW_W1 + M, 8)           # row  ROW_B1,              cols [0, H)
ROW_W2 = _round_up(ROW_B1 + 1, 8)           # rows [ROW_W2, ROW_W2+H),  cols [0, C_PAD)
ROW_B2 = _round_up(ROW_W2 + H, 8)           # row  ROW_B2,              cols [0, C_PAD)
N_ROWS = _round_up(ROW_B2 + 1, 8)           # 80 rows x 128 lanes  (~40 KiB f32)


def stacking_kernel(x_ref, w_ref, out_ref):
    """One batch tile of the full stacking forward (3 matmuls, weights VMEM resident)."""
    x = x_ref[...]                                                # (blk_b, D)
    cdt = w_ref.dtype                                             # compute dtype

    # Static slices of the single packed weight slab (no extra DMAs).
    wd = w_ref[ROW_WD:ROW_WD + D, 0:M]                            # (D, M)
    bd = w_ref[ROW_BD:ROW_BD + 1, 0:M]                            # (1, M)
    w1 = w_ref[ROW_W1:ROW_W1 + M, 0:H]                            # (M, H)
    b1 = w_ref[ROW_B1:ROW_B1 + 1, 0:H]                            # (1, H)
    w2 = w_ref[ROW_W2:ROW_W2 + H, 0:C_PAD]                        # (H, C_PAD)
    b2 = w_ref[ROW_B2:ROW_B2 + 1, 0:C_PAD]                        # (1, C_PAD)

    # Fused base heads: per-model class-logit difference, one MXU pass.
    d = jnp.dot(x, wd, preferred_element_type=jnp.float32) + bd   # (blk_b, M), f32

    # softmax over 2 classes == sigmoid of the logit difference (stable form:
    # single EUP exp, no overflow for very negative d).
    e = jnp.exp(-jnp.abs(d))
    p0 = jnp.where(d >= 0, 1.0, e) / (1.0 + e)                    # (blk_b, M), f32

    # Meta classifier; the "1 - p0" columns were pre-folded into w1/b1.
    h = jnp.dot(p0.astype(cdt), w1,
                preferred_element_type=jnp.float32) + b1          # (blk_b, H)
    h = jnp.maximum(h, 0.0)

    out = jnp.dot(h.astype(cdt), w2,
                  preferred_element_type=jnp.float32) + b2        # (blk_b, C_PAD)
    out_ref[...] = out.astype(out_ref.dtype)
    # TODO(synk): classifier.dnn source unavailable; assumed ReLU MLP emitting
    # raw logits (no dropout / final softmax), same assumption as before.


def pack_params(w_base, b_base, w1, b1, w2, b2, compute_dtype=jnp.float32):
    """Model-load-time (NOT per-call) folding of all weight-only algebra into one
    lane-dense (N_ROWS, 128) slab that stays VMEM-resident across grid steps."""
    # Fuse the M base heads into one logit-difference matmul.
    wd = jnp.transpose(w_base[:, :, 0] - w_base[:, :, 1])         # (D, M)
    bd = b_base[:, 0] - b_base[:, 1]                              # (M,)

    # Fold preds layout [m0c0, m0c1, m1c0, m1c1, ...] and p1 = 1 - p0 into layer 1.
    w1_even = w1[0::2]                                            # (M, H) class-0 rows
    w1_odd = w1[1::2]                                             # (M, H) class-1 rows
    w1_fold = w1_even - w1_odd                                    # (M, H)
    b1_fold = b1 + jnp.sum(w1_odd, axis=0)                        # (H,)

    slab = jnp.zeros((N_ROWS, LANES), jnp.float32)
    slab = slab.at[ROW_WD:ROW_WD + D, :M].set(wd)
    slab = slab.at[ROW_BD, :M].set(bd)
    slab = slab.at[ROW_W1:ROW_W1 + M, :H].set(w1_fold)
    slab = slab.at[ROW_B1, :H].set(b1_fold)
    slab = slab.at[ROW_W2:ROW_W2 + H, :C].set(w2)                 # zero-padded to 128 lanes
    slab = slab.at[ROW_B2, :C].set(b2)
    return slab.astype(compute_dtype)


def _choose_block(batch):
    """Batch tile: big enough to amortize ~0.35 µs/step overhead, >=2 grid steps
    so ("parallel",) shards across v7x's two TensorCores, <=2048 rows, multiple
    of 8, sized to minimize padding for awkward batch sizes."""
    if batch <= 8:
        return 8
    target_steps = max(2, pl.cdiv(batch, 2048))
    return _round_up(pl.cdiv(batch, target_steps), 8)


@functools.partial(jax.jit, static_argnames=("out_dtype",))
def stacking_forward(x, slab, out_dtype=jnp.float32):
    """Per-call path: cast/pad x, one pallas_call, slice real logits back out."""
    batch = x.shape[0]
    blk_b = _choose_block(batch)
    b_pad = _round_up(batch, blk_b)

    xc = x.astype(slab.dtype)                 # bf16 path halves input DMA bytes
    if b_pad != batch:
        xc = jnp.pad(xc, ((0, b_pad - batch), (0, 0)))
    grid = (b_pad // blk_b,)

    bytes_accessed = (xc.size * xc.dtype.itemsize
                      + slab.size * slab.dtype.itemsize
                      + b_pad * C_PAD * jnp.dtype(out_dtype).itemsize)
    cost = pl.CostEstimate(
        flops=2 * b_pad * (D * M + M * H + H * C_PAD),
        transcendentals=b_pad * M,
        bytes_accessed=bytes_accessed,
    )

    out = pl.pallas_call(
        stacking_kernel,
        out_shape=jax.ShapeDtypeStruct((b_pad, C_PAD), out_dtype),
        grid=grid,
        in_specs=[
            pl.BlockSpec((blk_b, D), lambda i: (i, 0)),           # x: tiled over batch
            pl.BlockSpec((N_ROWS, LANES), lambda i: (0, 0)),      # packed weights: resident
        ],
        out_specs=pl.BlockSpec((blk_b, C_PAD), lambda i: (i, 0)),
        compiler_params=pltpu.CompilerParams(
            dimension_semantics=("parallel",)),                   # 2-TC sharding on v7x
        cost_estimate=cost,
    )(xc, slab)

    return out[:batch, :C]


def reference_forward(x, w_base, b_base, w1, b1, w2, b2):
    """Pure-JAX reference matching the original (unfused) module forward."""
    probs = []
    for i in range(M):
        logits = x @ w_base[i] + b_base[i]
        probs.append(jax.nn.softmax(logits, axis=-1))
    preds = jnp.concatenate(probs, axis=-1)
    h = jnp.maximum(preds @ w1 + b1, 0.0)
    return h @ w2 + b2


if __name__ == "__main__":
    key = jax.random.PRNGKey(0)
    kx, kwb, kbb, kw1, kb1, kw2, kb2 = jax.random.split(key, 7)

    x = jax.random.normal(kx, (B, D), dtype=jnp.float32)

    # base model params: M stacked linear heads D -> C
    w_base = 0.1 * jax.random.normal(kwb, (M, D, C), dtype=jnp.float32)
    b_base = 0.1 * jax.random.normal(kbb, (M, C), dtype=jnp.float32)

    # meta DNN params: (M*C -> H), (H -> C)
    w1 = 0.1 * jax.random.normal(kw1, (X_SIZE, H), dtype=jnp.float32)
    b1 = 0.1 * jax.random.normal(kb1, (H,), dtype=jnp.float32)
    w2 = 0.1 * jax.random.normal(kw2, (H, C), dtype=jnp.float32)
    b2 = 0.1 * jax.random.normal(kb2, (C,), dtype=jnp.float32)

    ref = reference_forward(x, w_base, b_base, w1, b1, w2, b2)

    # --- f32 path: strict check against the unfused reference ---
    slab_f32 = pack_params(w_base, b_base, w1, b1, w2, b2, jnp.float32)
    out = jax.block_until_ready(stacking_forward(x, slab_f32))
    assert out.shape == (B, C)
    assert jnp.allclose(out, ref, atol=1e-5, rtol=1e-5), \
        jnp.max(jnp.abs(out - ref))

    # --- bf16 path (halved input DMA + output writeback): relaxed tolerance ---
    slab_bf16 = pack_params(w_base, b_base, w1, b1, w2, b2, jnp.bfloat16)
    out_bf = jax.block_until_ready(
        stacking_forward(x, slab_bf16, out_dtype=jnp.bfloat16)).astype(jnp.float32)
    assert out_bf.shape == (B, C)
    assert jnp.allclose(out_bf, ref, atol=3e-2, rtol=3e-2), \
        jnp.max(jnp.abs(out_bf - ref))

    print("KERNEL_OK")
</pallas_src>

<mosaic_0001>
module attributes {stable_mosaic.version = 11 : i64} {
  func.func @stacking_kernel(%arg0: i32, %arg1: memref<128x16xf32, #tpu.memory_space<vmem>>, %arg2: memref<80x128xf32, #tpu.memory_space<vmem>>, %arg3: memref<128x128xf32, #tpu.memory_space<vmem>>) attributes {dimension_semantics = [#tpu.dimension_semantics<parallel>], iteration_bounds = array<i64: 2>, scalar_prefetch = 0 : i64, scratch_operands = 0 : i64, tpu.core_type = #tpu.core_type<tc>, window_params = [{transform_indices = @transform_0, window_bounds = array<i64: 128, 16>}, {pipeline_mode = #tpu.pipeline_mode<synchronous>, transform_indices = @transform_1, window_bounds = array<i64: 80, 128>}, {transform_indices = @transform_2, window_bounds = array<i64: 128, 128>}]} {
    %c0 = arith.constant 0 : index
    %c0_0 = arith.constant 0 : index
    %0 = vector.load %arg1[%c0, %c0_0] : memref<128x16xf32, #tpu.memory_space<vmem>>, vector<128x16xf32>
    %c0_1 = arith.constant 0 : index
    %c0_2 = arith.constant 0 : index
    %1 = vector.load %arg2[%c0_1, %c0_2] : memref<80x128xf32, #tpu.memory_space<vmem>>, vector<16x3xf32>
    %c16 = arith.constant 16 : index
    %c0_3 = arith.constant 0 : index
    %2 = vector.load %arg2[%c16, %c0_3] : memref<80x128xf32, #tpu.memory_space<vmem>>, vector<1x3xf32>
    %c24 = arith.constant 24 : index
    %c0_4 = arith.constant 0 : index
    %3 = vector.load %arg2[%c24, %c0_4] : memref<80x128xf32, #tpu.memory_space<vmem>>, vector<3x32xf32>
    %c32 = arith.constant 32 : index
    %c0_5 = arith.constant 0 : index
    %4 = vector.load %arg2[%c32, %c0_5] : memref<80x128xf32, #tpu.memory_space<vmem>>, vector<1x32xf32>
    %c40 = arith.constant 40 : index
    %c0_6 = arith.constant 0 : index
    %5 = vector.load %arg2[%c40, %c0_6] : memref<80x128xf32, #tpu.memory_space<vmem>>, vector<32x128xf32>
    %c72 = arith.constant 72 : index
    %c0_7 = arith.constant 0 : index
    %6 = vector.load %arg2[%c72, %c0_7] : memref<80x128xf32, #tpu.memory_space<vmem>>, vector<1x128xf32>
    %cst = arith.constant dense<0.000000e+00> : vector<128x3xf32>
    %7 = tpu.matmul %0, %1, %cst {dimension_numbers = #tpu.dot_dimension_numbers<[1], [0], [0], [1], [0, 0, 1, 1], [], []>} : vector<128x16xf32>, vector<16x3xf32>, vector<128x3xf32> -> vector<128x3xf32>
    %8 = vector.broadcast %2 : vector<1x3xf32> to vector<128x3xf32>
    %9 = arith.addf %7, %8 : vector<128x3xf32>
    %10 = math.absf %9 : vector<128x3xf32>
    %cst_8 = arith.constant 0.000000e+00 : f32
    %11 = vector.broadcast %cst_8 : f32 to vector<128x3xf32>
    %12 = arith.subf %11, %10 : vector<128x3xf32>
    %13 = math.exp %12 : vector<128x3xf32>
    %cst_9 = arith.constant 0.000000e+00 : f32
    %14 = vector.broadcast %cst_9 : f32 to vector<128x3xf32>
    %15 = arith.cmpf oge, %9, %14 : vector<128x3xf32>
    %cst_10 = arith.constant 1.000000e+00 : f32
    %16 = vector.broadcast %cst_10 : f32 to vector<128x3xf32>
    %17 = arith.select %15, %16, %13 : vector<128x3xi1>, vector<128x3xf32>
    %cst_11 = arith.constant 1.000000e+00 : f32
    %18 = vector.broadcast %cst_11 : f32 to vector<128x3xf32>
    %19 = arith.addf %18, %13 : vector<128x3xf32>
    %20 = arith.divf %17, %19 : vector<128x3xf32>
    %cst_12 = arith.constant dense<0.000000e+00> : vector<128x32xf32>
    %21 = tpu.matmul %20, %3, %cst_12 {dimension_numbers = #tpu.dot_dimension_numbers<[1], [0], [0], [1], [0, 0, 1, 1], [], []>} : vector<128x3xf32>, vector<3x32xf32>, vector<128x32xf32> -> vector<128x32xf32>
    %22 = vector.broadcast %4 : vector<1x32xf32> to vector<128x32xf32>
    %23 = arith.addf %21, %22 : vector<128x32xf32>
    %cst_13 = arith.constant 0.000000e+00 : f32
    %24 = vector.broadcast %cst_13 : f32 to vector<128x32xf32>
    %25 = arith.maximumf %23, %24 : vector<128x32xf32>
    %cst_14 = arith.constant dense<0.000000e+00> : vector<128x128xf32>
    %26 = tpu.matmul %25, %5, %cst_14 {dimension_numbers = #tpu.dot_dimension_numbers<[1], [0], [0], [1], [0, 0, 1, 1], [], []>} : vector<128x32xf32>, vector<32x128xf32>, vector<128x128xf32> -> vector<128x128xf32>
    %27 = vector.broadcast %6 : vector<1x128xf32> to vector<128x128xf32>
    %28 = arith.addf %26, %27 : vector<128x128xf32>
    %c0_15 = arith.constant 0 : index
    %c0_16 = arith.constant 0 : index
    %29 = vector.load %arg3[%c0_15, %c0_16] : memref<128x128xf32, #tpu.memory_space<vmem>>, vector<128x128xf32>
    tpu.vector_store %arg3[%c0_15, %c0_16], %28 {strides = array<i32>} : memref<128x128xf32, #tpu.memory_space<vmem>>, vector<128x128xf32>,
    return
  }
  func.func @transform_0(%arg0: i32) -> (i32, i32) {
    %c0_i32 = arith.constant 0 : i32
    %c0_i32_0 = arith.constant 0 : i32
    return %arg0, %c0_i32 : i32, i32
  }
  func.func @transform_1(%arg0: i32) -> (i32, i32) {
    %c0_i32 = arith.constant 0 : i32
    %c0_i32_0 = arith.constant 0 : i32
    %c0_i32_1 = arith.constant 0 : i32
    return %c0_i32, %c0_i32_0 : i32, i32
  }
  func.func @transform_2(%arg0: i32) -> (i32, i32) {
    %c0_i32 = arith.constant 0 : i32
    %c0_i32_0 = arith.constant 0 : i32
    return %arg0, %c0_i32 : i32, i32
  }
}

</mosaic_0001>

<llo_original>
// kernel: stacking_forward.1
$region0: #{stacking_forward.1}
  #allocation0 [shape = 'u32[]', space=smem, size = 0x4, offset = 0x4, fixed_abs, tag = 'smem constant byte address 0x4 - core index']
  #allocation1 [shape = 'u32[144,128]{1,0:T(1,128)}', space=vmem, size = 0x12000, scoped, tag = 'internal scratch']
  %s0 = inlined_call_operand.vmem [shape: f32[256,16], index: 0, kind: input, shape index: {}]
  %s1 = inlined_call_operand.vmem [shape: f32[80,128], index: 1, kind: input, shape index: {}]
  %s2 = inlined_call_operand.vmem [shape: f32[256,128], index: 2, kind: output, shape index: {}]
  %s3 = sld [smem:[#allocation0]]
  $region41: #{stacking_forward.1} parent=0
    _
  %s5 = ssub.s32 1, %s3
  %s6 = scalar_select 0, %s5, %s3
  loop: start=0, step=1, limit=4
  $region2: #{stacking_forward.1} parent=0 // loop_pre_header
    _
  $region3: #{stacking_forward.1} parent=0 // loop_header
    %s8 = sphi 0, %s12
    %p9 = scmp.ge.s32.totalorder %s8, 4
    %s18 = sphi 0, %s20
    %s21 = sphi 0, %s18
    %s22 = sphi 0, %s21
    %s38 = sphi 0, %s22
    %s42 = sphi 0, %s42
    %s44 = sphi 0, %s42
    %s45 = sphi 0, %s44
    %s59 = sphi 0, %s45
    %s65 = sphi 0, %s67
    %s68 = sphi 0, %s65
    %s69 = sphi 0, %s68
    %s85 = sphi 0, %s69
  $region4: #{stacking_forward.1} parent=0 // loop_header_branch
    %11 = sbr.rel (%p9) target = $region8
  $region5: #{stacking_forward.1} parent=0 // loop_body
    %s13 = ssub.s32 %s8, 1
    %s14 = ssub.s32 %s8, 2
    %s15 = sadd.s32 %s8, 1
    %s16 = ssub.s32 %s8, %s15
    %p17 = scmp.eq.s32.totalorder %s16, 0
    %s19 = sadd.s32 %s18, 1
    %s20 = scalar_select %p17, %s18, %s19
    %p23 = pneg %p17
    %p24 = scmp.eq.s32.totalorder %s8, 1
    %p25 = por %p23, %p24
    %p26 = scmp.ne.s32.totalorder %s18, %s21
    %p27 = scmp.eq.s32.totalorder %s8, 0
    %p28 = por %p26, %p27
    %p29 = scmp.ne.s32.totalorder %s18, %s21
    %p30 = scmp.eq.s32.totalorder %s13, 1
    %p31 = por %p29, %p30
    %p32 = scmp.ne.s32.totalorder %s21, %s22
    %p33 = scmp.eq.s32.totalorder %s13, 0
    %p34 = por %p32, %p33
    %p35 = scmp.ne.s32.totalorder %s21, %s22
    %p36 = scmp.eq.s32.totalorder %s14, 1
    %p37 = por %p35, %p36
    %p39 = scmp.ne.s32.totalorder %s22, %s38
    %p40 = scmp.eq.s32.totalorder %s14, 0
    %p41 = por %p39, %p40
    %s43 = sadd.s32 %s42, 1
    %p46 = scmp.eq.s32.totalorder %s8, 1
    %p47 = scmp.ne.s32.totalorder %s42, %s44
    %p48 = scmp.eq.s32.totalorder %s8, 0
    %p49 = por %p47, %p48
    %p50 = scmp.ne.s32.totalorder %s42, %s44
    %p51 = scmp.eq.s32.totalorder %s13, 1
    %p52 = por %p50, %p51
    %p53 = scmp.ne.s32.totalorder %s44, %s45
    %p54 = scmp.eq.s32.totalorder %s13, 0
    %p55 = por %p53, %p54
    %p56 = scmp.ne.s32.totalorder %s44, %s45
    %p57 = scmp.eq.s32.totalorder %s14, 1
    %p58 = por %p56, %p57
    %p60 = scmp.ne.s32.totalorder %s45, %s59
    %p61 = scmp.eq.s32.totalorder %s14, 0
    %p62 = por %p60, %p61
    %s63 = ssub.s32 %s8, %s15
    %p64 = scmp.eq.s32.totalorder %s63, 0
    %s66 = sadd.s32 %s65, 1
    %s67 = scalar_select %p64, %s65, %s66
    %p70 = pneg %p64
    %p71 = scmp.eq.s32.totalorder %s8, 1
    %p72 = por %p70, %p71
    %p73 = scmp.ne.s32.totalorder %s65, %s68
    %p74 = scmp.eq.s32.totalorder %s8, 0
    %p75 = por %p73, %p74
    %p76 = scmp.ne.s32.totalorder %s65, %s68
    %p77 = scmp.eq.s32.totalorder %s13, 1
    %p78 = por %p76, %p77
    %p79 = scmp.ne.s32.totalorder %s68, %s69
    %p80 = scmp.eq.s32.totalorder %s13, 0
    %p81 = por %p79, %p80
    %p82 = scmp.ne.s32.totalorder %s68, %s69
    %p83 = scmp.eq.s32.totalorder %s14, 1
    %p84 = por %p82, %p83
    %p86 = scmp.ne.s32.totalorder %s69, %s85
    %p87 = scmp.eq.s32.totalorder %s14, 0
    %p88 = por %p86, %p87
    %p89 = scmp.le.s32.totalorder 1, %s8
    %p90 = scmp.lt.s32.totalorder %s8, 3
    %p91 = pnand %p89, %p90
    %p92 = pneg %p91
    // Predicated region
    $region9: #{stacking_forward.1} parent=5 // pred_check
      _
    $region10: #{stacking_forward.1} parent=5 // pred_check_branch
      %94 = sbr.rel (%p91) target = $region12
    $region11: #{stacking_forward.1} parent=5 // pred_region
      %s95 = ssub.s32 %s8, 1
      // Predicated region
      $region13: #{stacking_forward.1} parent=11 // pred_check
        %p96 = pneg %p55
      $region14: #{stacking_forward.1} parent=11 // pred_check_branch
        %98 = sbr.rel (%p96) target = $region16
      $region15: #{stacking_forward.1} parent=11 // pred_region
        _
      $region16: #{stacking_forward.1} parent=11 // pred_fallthru
        _
    $region12: #{stacking_forward.1} parent=5 // pred_fallthru
      _
    %p99 = scmp.lt.s32.totalorder %s8, 2
    // Predicated region
    $region17: #{stacking_forward.1} parent=5 // pred_check
      %p100 = pneg %p99
    $region18: #{stacking_forward.1} parent=5 // pred_check_branch
      %102 = sbr.rel (%p100) target = $region20
    $region19: #{stacking_forward.1} parent=5 // pred_region
      // Predicated region
      $region21: #{stacking_forward.1} parent=19 // pred_check
        %p103 = pneg %p28
      $region22: #{stacking_forward.1} parent=19 // pred_check_branch
        %105 = sbr.rel (%p103) target = $region24
      $region23: #{stacking_forward.1} parent=19 // pred_region
        %s106 = smul.u32 16, %s8
        %p107 = scmp.lt.s32.totalorder %s106, 31
        %s108 = scalar_select %p107, %s106, 31
        %s109 = smul.addr %s108, 8
        %s110 = scalar_lea.vmem %s0, %s109
        %s111 = smul.u32 16, %s8
      $region24: #{stacking_forward.1} parent=19 // pred_fallthru
        _
    $region20: #{stacking_forward.1} parent=5 // pred_fallthru
      _
    %p112 = scmp.le.s32.totalorder 1, %s8
    %p113 = scmp.lt.s32.totalorder %s8, 3
    %p114 = pnand %p112, %p113
    %p115 = pneg %p114
    // Predicated region
    $region25: #{stacking_forward.1} parent=5 // pred_check
      _
    $region26: #{stacking_forward.1} parent=5 // pred_check_branch
      %117 = sbr.rel (%p114) target = $region28
    $region27: #{stacking_forward.1} parent=5 // pred_region
      %s118 = ssub.s32 %s8, 1
      %s119 = smul.u32 16, %s13
      %p120 = scmp.lt.s32.totalorder %s119, 31
      %s121 = scalar_select %p120, %s119, 31
      %s122 = smul.addr %s121, 8
      %s123 = scalar_lea.vmem %s0, %s122
      %p124 = pneg %p34
      %p125 = pneg %p31
      %p126 = pneg %p55
      %p127 = pneg %p52
      %p128 = pneg %p81
      %p129 = pneg %p78
      %s130 = smul.u32 16, %s13
      %p131 = scmp.lt.s32.totalorder %s130, 31
      %s132 = scalar_select %p131, %s130, 31
      %s133 = smul.addr %s132, 8
      %s134 = scalar_lea.vmem %s2, %s133
      %s135 = smul.u32 16, %s13
      %p136 = scmp.lt.s32.totalorder %s135, 31
      %s137 = scalar_select %p136, %s135, 31
      %s138 = smul.addr %s137, 8
      %s139 = scalar_lea.vmem %s0, %s138
      %s140 = smul.u32 16, %s13
      %s141 = smul.u32 16, %s13
      %p142 = scmp.lt.s32.totalorder %s141, 31
      %s143 = scalar_select %p142, %s141, 31
      %s144 = smul.addr %s143, 8
      %s145 = scalar_lea.vmem %s2, %s144
      %s146 = smul.u32 16, %s13
      %v147 = vld [vmem:[%s139] sm:$0xff]
      %v148 = vld [vmem:[%s139 + $0x8] sm:$0xff]
      %v149 = vld [vmem:[%s139 + $0x10] sm:$0xff]
      %v150 = vld [vmem:[%s139 + $0x18] sm:$0xff]
      %v151 = vld [vmem:[%s139 + $0x20] sm:$0xff]
      %v152 = vld [vmem:[%s139 + $0x28] sm:$0xff]
      %v153 = vld [vmem:[%s139 + $0x30] sm:$0xff]
      %v154 = vld [vmem:[%s139 + $0x38] sm:$0xff]
      %v155 = vld [vmem:[%s139 + $0x40] sm:$0xff]
      %v156 = vld [vmem:[%s139 + $0x48] sm:$0xff]
      %v157 = vld [vmem:[%s139 + $0x50] sm:$0xff]
      %v158 = vld [vmem:[%s139 + $0x58] sm:$0xff]
      %v159 = vld [vmem:[%s139 + $0x60] sm:$0xff]
      %v160 = vld [vmem:[%s139 + $0x68] sm:$0xff]
      %v161 = vld [vmem:[%s139 + $0x70] sm:$0xff]
      %v162 = vld [vmem:[%s139 + $0x78] sm:$0xff]
      %v163 = vld [vmem:[%s1] sm:$0xff]
      %v164 = vld [vmem:[%s1 + $0x8] sm:$0xff]
      %v165 = vld [vmem:[%s1 + $0x10] sm:$0x1]
      %v166 = vld [vmem:[%s1 + $0x18] sm:$0x7]
      %v167 = vld [vmem:[%s1 + $0x20] sm:$0x1]
      %v168 = vld [vmem:[%s1 + $0x28] sm:$0xff]
      %v169 = vld [vmem:[%s1 + $0x30] sm:$0xff]
      %v170 = vld [vmem:[%s1 + $0x38] sm:$0xff]
      %v171 = vld [vmem:[%s1 + $0x40] sm:$0xff]
      %v172 = vld [vmem:[%s1 + $0x48] sm:$0x1]
      %v173 = vlaneseq
      %v174 = vshrl.u32 %v173, 7
      %v175 = vsub.s32 0, %v174
      %v176 = vrot.slane %v165, %v175
      %vm177 = vcmask 130048
      %v179 = vsel %vm177, %v147, 0
      %v182 = vsel %vm177, %v148, 0
      %v185 = vsel %vm177, %v149, 0
      %v188 = vsel %vm177, %v150, 0
      %v191 = vsel %vm177, %v151, 0
      %v194 = vsel %vm177, %v152, 0
      %v197 = vsel %vm177, %v153, 0
      %v200 = vsel %vm177, %v154, 0
      %v203 = vsel %vm177, %v155, 0
      %v206 = vsel %vm177, %v156, 0
      %v209 = vsel %vm177, %v157, 0
      %v212 = vsel %vm177, %v158, 0
      %v215 = vsel %vm177, %v159, 0
      %v218 = vsel %vm177, %v160, 0
      %v221 = vsel %vm177, %v161, 0
      %v224 = vsel %vm177, %v162, 0
      %226 = vmatprep.subr.mxu0 0.0
      %227 = vmatpush1.msra.mxu0 %v163
      %228 = vmatprep.subr.mxu0 0.0
      %229 = vmatpush1.msra.mxu0 %v164
      %230 = vmatprep.subr.mxu0 0.0
      %231 = vmatpush1.msra.mxu0 0.0
      %232 = vmatprep.subr.mxu0 0.0
      %233 = vmatpush1.msra.mxu0 0.0
      %234 = vmatprep.subr.mxu0 0.0
      %235 = vmatpush1.msra.mxu0 0.0
      %236 = vmatprep.subr.mxu0 0.0
      %237 = vmatpush1.msra.mxu0 0.0
      %238 = vmatprep.subr.mxu0 0.0
      %239 = vmatpush1.msra.mxu0 0.0
      %240 = vmatprep.subr.mxu0 0.0
      %241 = vmatpush1.msra.mxu0 0.0
      %242 = vmatprep.subr.mxu0 0.0
      %243 = vmatpush1.msra.mxu0 0.0
      %244 = vmatprep.subr.mxu0 0.0
      %245 = vmatpush1.msra.mxu0 0.0
      %246 = vmatprep.subr.mxu0 0.0
      %247 = vmatpush1.msra.mxu0 0.0
      %248 = vmatprep.subr.mxu0 0.0
      %249 = vmatpush1.msra.mxu0 0.0
      %250 = vmatprep.subr.mxu0 0.0
      %251 = vmatpush1.msra.mxu0 0.0
      %252 = vmatprep.subr.mxu0 0.0
      %253 = vmatpush1.msra.mxu0 0.0
      %254 = vmatprep.subr.mxu0 0.0
      %255 = vmatpush1.msra.mxu0 0.0
      %256 = vmatprep.subr.mxu0 0.0
      %257 = vmatpush1.msra.mxu0 0.0
      %258 = vmatprep.subr.mxu0 0.0
      %259 = vmatpush1.msra.mxu0 0.0
      %260 = vmatprep.subr.mxu0 0.0
      %261 = vmatpush1.msra.mxu0 0.0
      %262 = vmatprep.subr.mxu0 0.0
      %263 = vmatpush1.msra.mxu0 0.0
      %264 = vmatprep.subr.mxu0 0.0
      %265 = vmatpush1.msra.mxu0 0.0
      %266 = vmatprep.subr.mxu0 0.0
      %267 = vmatpush1.msra.mxu0 0.0
      %268 = vmatprep.subr.mxu0 0.0
      %269 = vmatpush1.msra.mxu0 0.0
      %270 = vmatprep.subr.mxu0 0.0
      %271 = vmatpush1.msra.mxu0 0.0
      %272 = vmatprep.subr.mxu0 0.0
      %273 = vmatpush1.msra.mxu0 0.0
      %274 = vmatprep.subr.mxu0 0.0
      %275 = vmatpush1.msra.mxu0 0.0
      %276 = vmatprep.subr.mxu0 0.0
      %277 = vmatpush1.msra.mxu0 0.0
      %278 = vmatprep.subr.mxu0 0.0
      %279 = vmatpush1.msra.mxu0 0.0
      %280 = vmatprep.subr.mxu0 0.0
      %281 = vmatpush1.msra.mxu0 0.0
      %282 = vmatprep.subr.mxu0 0.0
      %283 = vmatpush1.msra.mxu0 0.0
      %284 = vmatprep.subr.mxu0 0.0
      %285 = vmatpush1.msra.mxu0 0.0
      %286 = vmatprep.subr.mxu0 0.0
      %287 = vmatpush1.msra.mxu0 0.0
      %288 = vmatprep.subr.mxu0 0.0
      %289 = vmatpush1.msra.mxu0 0.0
      %290 = vmatprep.mubr.f32.mxu0 0.0
      %291 = vmatmul.mubr.f32.gmra.mrb[0].mxu0 %v179
      %v292 = vpop.f32.mrb[0].mxu0
      %v293 = vadd.f32 %v176, %v292
      %v294 = vpop.f32.mrb[0].mxu0
      %295 = vmatprep.mubr.f32.mxu0 0.0
      %296 = vmatmul.mubr.f32.gmra.mrb[0].mxu0 %v182
      %v297 = vpop.f32.mrb[0].mxu0
      %v298 = vadd.f32 %v176, %v297
      %v299 = vpop.f32.mrb[0].mxu0
      %300 = vmatprep.mubr.f32.mxu0 0.0
      %301 = vmatmul.mubr.f32.gmra.mrb[0].mxu0 %v185
      %v302 = vpop.f32.mrb[0].mxu0
      %v303 = vadd.f32 %v176, %v302
      %v304 = vpop.f32.mrb[0].mxu0
      %305 = vmatprep.mubr.f32.mxu0 0.0
      %306 = vmatmul.mubr.f32.gmra.mrb[0].mxu0 %v188
      %v307 = vpop.f32.mrb[0].mxu0
      %v308 = vadd.f32 %v176, %v307
      %v309 = vpop.f32.mrb[0].mxu0
      %310 = vmatprep.mubr.f32.mxu0 0.0
      %311 = vmatmul.mubr.f32.gmra.mrb[0].mxu0 %v191
      %v312 = vpop.f32.mrb[0].mxu0
      %v313 = vadd.f32 %v176, %v312
      %v314 = vpop.f32.mrb[0].mxu0
      %315 = vmatprep.mubr.f32.mxu0 0.0
      %316 = vmatmul.mubr.f32.gmra.mrb[0].mxu0 %v194
      %v317 = vpop.f32.mrb[0].mxu0
      %v318 = vadd.f32 %v176, %v317
      %v319 = vpop.f32.mrb[0].mxu0
      %320 = vmatprep.mubr.f32.mxu0 0.0
      %321 = vmatmul.mubr.f32.gmra.mrb[0].mxu0 %v197
      %v322 = vpop.f32.mrb[0].mxu0
      %v323 = vadd.f32 %v176, %v322
      %v324 = vpop.f32.mrb[0].mxu0
      %325 = vmatprep.mubr.f32.mxu0 0.0
      %326 = vmatmul.mubr.f32.gmra.mrb[0].mxu0 %v200
      %v327 = vpop.f32.mrb[0].mxu0
      %v328 = vadd.f32 %v176, %v327
      %v329 = vpop.f32.mrb[0].mxu0
      %330 = vmatprep.mubr.f32.mxu0 0.0
      %331 = vmatmul.mubr.f32.gmra.mrb[0].mxu0 %v203
      %v332 = vpop.f32.mrb[0].mxu0
      %v333 = vadd.f32 %v176, %v332
      %v334 = vpop.f32.mrb[0].mxu0
      %335 = vmatprep.mubr.f32.mxu0 0.0
      %336 = vmatmul.mubr.f32.gmra.mrb[0].mxu0 %v206
      %v337 = vpop.f32.mrb[0].mxu0
      %v338 = vadd.f32 %v176, %v337
      %v339 = vpop.f32.mrb[0].mxu0
      %340 = vmatprep.mubr.f32.mxu0 0.0
      %341 = vmatmul.mubr.f32.gmra.mrb[0].mxu0 %v209
      %v342 = vpop.f32.mrb[0].mxu0
      %v343 = vadd.f32 %v176, %v342
      %v344 = vpop.f32.mrb[0].mxu0
      %345 = vmatprep.mubr.f32.mxu0 0.0
      %346 = vmatmul.mubr.f32.gmra.mrb[0].mxu0 %v212
      %v347 = vpop.f32.mrb[0].mxu0
      %v348 = vadd.f32 %v176, %v347
      %v349 = vpop.f32.mrb[0].mxu0
      %350 = vmatprep.mubr.f32.mxu0 0.0
      %351 = vmatmul.mubr.f32.gmra.mrb[0].mxu0 %v215
      %v352 = vpop.f32.mrb[0].mxu0
      %v353 = vadd.f32 %v176, %v352
      %v354 = vpop.f32.mrb[0].mxu0
      %355 = vmatprep.mubr.f32.mxu0 0.0
      %356 = vmatmul.mubr.f32.gmra.mrb[0].mxu0 %v218
      %v357 = vpop.f32.mrb[0].mxu0
      %v358 = vadd.f32 %v176, %v357
      %v359 = vpop.f32.mrb[0].mxu0
      %360 = vmatprep.mubr.f32.mxu0 0.0
      %361 = vmatmul.mubr.f32.gmra.mrb[0].mxu0 %v221
      %v362 = vpop.f32.mrb[0].mxu0
      %v363 = vadd.f32 %v176, %v362
      %v364 = vpop.f32.mrb[0].mxu0
      %365 = vmatprep.mubr.f32.mxu0 0.0
      %366 = vmatmul.mubr.f32.gmra.mrb[0].mxu0 %v224
      %v367 = vpop.f32.mrb[0].mxu0
      %v368 = vadd.f32 %v176, %v367
      %v369 = vpop.f32.mrb[0].mxu0
      %370 = vdwg.mxu0
      %v371 = vand.u32 2147483647, %v293
      %v372 = vand.u32 2147483647, %v298
      %v373 = vand.u32 2147483647, %v303
      %v374 = vand.u32 2147483647, %v308
      %v375 = vand.u32 2147483647, %v313
      %v376 = vand.u32 2147483647, %v318
      %v377 = vand.u32 2147483647, %v323
      %v378 = vand.u32 2147483647, %v328
      %v379 = vand.u32 2147483647, %v333
      %v380 = vand.u32 2147483647, %v338
      %v381 = vand.u32 2147483647, %v343
      %v382 = vand.u32 2147483647, %v348
      %v383 = vand.u32 2147483647, %v353
      %v384 = vand.u32 2147483647, %v358
      %v385 = vand.u32 2147483647, %v363
      %v386 = vand.u32 2147483647, %v368
      %v387 = vsub.f32 0.0, %v371
      %v388 = vsub.f32 0.0, %v372
      %v389 = vsub.f32 0.0, %v373
      %v390 = vsub.f32 0.0, %v374
      %v391 = vsub.f32 0.0, %v375
      %v392 = vsub.f32 0.0, %v376
      %v393 = vsub.f32 0.0, %v377
      %v394 = vsub.f32 0.0, %v378
      %v395 = vsub.f32 0.0, %v379
      %v396 = vsub.f32 0.0, %v380
      %v397 = vsub.f32 0.0, %v381
      %v398 = vsub.f32 0.0, %v382
      %v399 = vsub.f32 0.0, %v383
      %v400 = vsub.f32 0.0, %v384
      %v401 = vsub.f32 0.0, %v385
      %v402 = vsub.f32 0.0, %v386
      %v403 = vmul.f32 %v387, 1.442695
      %v404 = vpow.pop %v403
      %v405 = vmul.f32 %v388, 1.442695
      %v406 = vpow.pop %v405
      %v407 = vmul.f32 %v389, 1.442695
      %v408 = vpow.pop %v407
      %v409 = vmul.f32 %v390, 1.442695
      %v410 = vpow.pop %v409
      %v411 = vmul.f32 %v391, 1.442695
      %v412 = vpow.pop %v411
      %v413 = vmul.f32 %v392, 1.442695
      %v414 = vpow.pop %v413
      %v415 = vmul.f32 %v393, 1.442695
      %v416 = vpow.pop %v415
      %v417 = vmul.f32 %v394, 1.442695
      %v418 = vpow.pop %v417
      %v419 = vmul.f32 %v395, 1.442695
      %v420 = vpow.pop %v419
      %v421 = vmul.f32 %v396, 1.442695
      %v422 = vpow.pop %v421
      %v423 = vmul.f32 %v397, 1.442695
      %v424 = vpow.pop %v423
      %v425 = vmul.f32 %v398, 1.442695
      %v426 = vpow.pop %v425
      %v427 = vmul.f32 %v399, 1.442695
      %v428 = vpow.pop %v427
      %v429 = vmul.f32 %v400, 1.442695
      %v430 = vpow.pop %v429
      %v431 = vmul.f32 %v401, 1.442695
      %v432 = vpow.pop %v431
      %v433 = vmul.f32 %v402, 1.442695
      %v434 = vpow.pop %v433
      %vm435 = vcmp.ge.f32.partialorder %v293, 0.0
      %vm436 = vcmp.ge.f32.partialorder %v298, 0.0
      %vm437 = vcmp.ge.f32.partialorder %v303, 0.0
      %vm438 = vcmp.ge.f32.partialorder %v308, 0.0
      %vm439 = vcmp.ge.f32.partialorder %v313, 0.0
      %vm440 = vcmp.ge.f32.partialorder %v318, 0.0
      %vm441 = vcmp.ge.f32.partialorder %v323, 0.0
      %vm442 = vcmp.ge.f32.partialorder %v328, 0.0
      %vm443 = vcmp.ge.f32.partialorder %v333, 0.0
      %vm444 = vcmp.ge.f32.partialorder %v338, 0.0
      %vm445 = vcmp.ge.f32.partialorder %v343, 0.0
      %vm446 = vcmp.ge.f32.partialorder %v348, 0.0
      %vm447 = vcmp.ge.f32.partialorder %v353, 0.0
      %vm448 = vcmp.ge.f32.partialorder %v358, 0.0
      %vm449 = vcmp.ge.f32.partialorder %v363, 0.0
      %vm450 = vcmp.ge.f32.partialorder %v368, 0.0
      %v451 = vsel %vm435, 1.0, %v404
      %v452 = vsel %vm436, 1.0, %v406
      %v453 = vsel %vm437, 1.0, %v408
      %v454 = vsel %vm438, 1.0, %v410
      %v455 = vsel %vm439, 1.0, %v412
      %v456 = vsel %vm440, 1.0, %v414
      %v457 = vsel %vm441, 1.0, %v416
      %v458 = vsel %vm442, 1.0, %v418
      %v459 = vsel %vm443, 1.0, %v420
      %v460 = vsel %vm444, 1.0, %v422
      %v461 = vsel %vm445, 1.0, %v424
      %v462 = vsel %vm446, 1.0, %v426
      %v463 = vsel %vm447, 1.0, %v428
      %v464 = vsel %vm448, 1.0, %v430
      %v465 = vsel %vm449, 1.0, %v432
      %v466 = vsel %vm450, 1.0, %v434
      %v467 = vadd.f32 %v404, 1.0
      %v468 = vadd.f32 %v406, 1.0
      %v469 = vadd.f32 %v408, 1.0
      %v470 = vadd.f32 %v410, 1.0
      %v471 = vadd.f32 %v412, 1.0
      %v472 = vadd.f32 %v414, 1.0
      %v473 = vadd.f32 %v416, 1.0
      %v474 = vadd.f32 %v418, 1.0
      %v475 = vadd.f32 %v420, 1.0
      %v476 = vadd.f32 %v422, 1.0
      %v477 = vadd.f32 %v424, 1.0
      %v478 = vadd.f32 %v426, 1.0
      %v479 = vadd.f32 %v428, 1.0
      %v480 = vadd.f32 %v430, 1.0
      %v481 = vadd.f32 %v432, 1.0
      %v482 = vadd.f32 %v434, 1.0
      %v483 = vrcp.pop %v467
      %v484 = vmul.f32 %v451, %v483
      %v485 = vrcp.pop %v468
      %v486 = vmul.f32 %v452, %v485
      %v487 = vrcp.pop %v469
      %v488 = vmul.f32 %v453, %v487
      %v489 = vrcp.pop %v470
      %v490 = vmul.f32 %v454, %v489
      %v491 = vrcp.pop %v471
      %v492 = vmul.f32 %v455, %v491
      %v493 = vrcp.pop %v472
      %v494 = vmul.f32 %v456, %v493
      %v495 = vrcp.pop %v473
      %v496 = vmul.f32 %v457, %v495
      %v497 = vrcp.pop %v474
      %v498 = vmul.f32 %v458, %v497
      %v499 = vrcp.pop %v475
      %v500 = vmul.f32 %v459, %v499
      %v501 = vrcp.pop %v476
      %v502 = vmul.f32 %v460, %v501
      %v503 = vrcp.pop %v477
      %v504 = vmul.f32 %v461, %v503
      %v505 = vrcp.pop %v478
      %v506 = vmul.f32 %v462, %v505
      %v507 = vrcp.pop %v479
      %v508 = vmul.f32 %v463, %v507
      %v509 = vrcp.pop %v480
      %v510 = vmul.f32 %v464, %v509
      %v511 = vrcp.pop %v481
      %v512 = vmul.f32 %v465, %v511
      %v513 = vrcp.pop %v482
      %v514 = vmul.f32 %v466, %v513
      %v515 = vlaneseq
      %v516 = vshrl.u32 %v515, 7
      %v517 = vsub.s32 0, %v516
      %v518 = vrot.slane %v167, %v517
      %vm519 = vcmask 23552
      %v521 = vsel %vm519, %v484, 0
      %v524 = vsel %vm519, %v486, 0
      %v527 = vsel %vm519, %v488, 0
      %v530 = vsel %vm519, %v490, 0
      %v533 = vsel %vm519, %v492, 0
      %v536 = vsel %vm519, %v494, 0
      %v539 = vsel %vm519, %v496, 0
      %v542 = vsel %vm519, %v498, 0
      %v545 = vsel %vm519, %v500, 0
      %v548 = vsel %vm519, %v502, 0
      %v551 = vsel %vm519, %v504, 0
      %v554 = vsel %vm519, %v506, 0
      %v557 = vsel %vm519, %v508, 0
      %v560 = vsel %vm519, %v510, 0
      %v563 = vsel %vm519, %v512, 0
      %v566 = vsel %vm519, %v514, 0
      %vm568 = vcmask 1042432
      %v570 = vsel %vm568, %v166, 0
      %572 = vmatprep.subr.mxu0 0.0
      %573 = vmatpush1.msra.mxu0 %v570
      %574 = vmatprep.subr.mxu0 0.0
      %575 = vmatpush1.msra.mxu0 0.0
      %576 = vmatprep.subr.mxu0 0.0
      %577 = vmatpush1.msra.mxu0 0.0
      %578 = vmatprep.subr.mxu0 0.0
      %579 = vmatpush1.msra.mxu0 0.0
      %580 = vmatprep.subr.mxu0 0.0
      %581 = vmatpush1.msra.mxu0 0.0
      %582 = vmatprep.subr.mxu0 0.0
      %583 = vmatpush1.msra.mxu0 0.0
      %584 = vmatprep.subr.mxu0 0.0
      %585 = vmatpush1.msra.mxu0 0.0
      %586 = vmatprep.subr.mxu0 0.0
      %587 = vmatpush1.msra.mxu0 0.0
      %588 = vmatprep.subr.mxu0 0.0
      %589 = vmatpush1.msra.mxu0 0.0
      %590 = vmatprep.subr.mxu0 0.0
      %591 = vmatpush1.msra.mxu0 0.0
      %592 = vmatprep.subr.mxu0 0.0
      %593 = vmatpush1.msra.mxu0 0.0
      %594 = vmatprep.subr.mxu0 0.0
      %595 = vmatpush1.msra.mxu0 0.0
      %596 = vmatprep.subr.mxu0 0.0
      %597 = vmatpush1.msra.mxu0 0.0
      %598 = vmatprep.subr.mxu0 0.0
      %599 = vmatpush1.msra.mxu0 0.0
      %600 = vmatprep.subr.mxu0 0.0
      %601 = vmatpush1.msra.mxu0 0.0
      %602 = vmatprep.subr.mxu0 0.0
      %603 = vmatpush1.msra.mxu0 0.0
      %604 = vmatprep.subr.mxu0 0.0
      %605 = vmatpush1.msra.mxu0 0.0
      %606 = vmatprep.subr.mxu0 0.0
      %607 = vmatpush1.msra.mxu0 0.0
      %608 = vmatprep.subr.mxu0 0.0
      %609 = vmatpush1.msra.mxu0 0.0
      %610 = vmatprep.subr.mxu0 0.0
      %611 = vmatpush1.msra.mxu0 0.0
      %612 = vmatprep.subr.mxu0 0.0
      %613 = vmatpush1.msra.mxu0 0.0
      %614 = vmatprep.subr.mxu0 0.0
      %615 = vmatpush1.msra.mxu0 0.0
      %616 = vmatprep.subr.mxu0 0.0
      %617 = vmatpush1.msra.mxu0 0.0
      %618 = vmatprep.subr.mxu0 0.0
      %619 = vmatpush1.msra.mxu0 0.0
      %620 = vmatprep.subr.mxu0 0.0
      %621 = vmatpush1.msra.mxu0 0.0
      %622 = vmatprep.subr.mxu0 0.0
      %623 = vmatpush1.msra.mxu0 0.0
      %624 = vmatprep.subr.mxu0 0.0
      %625 = vmatpush1.msra.mxu0 0.0
      %626 = vmatprep.subr.mxu0 0.0
      %627 = vmatpush1.msra.mxu0 0.0
      %628 = vmatprep.subr.mxu0 0.0
      %629 = vmatpush1.msra.mxu0 0.0
      %630 = vmatprep.subr.mxu0 0.0
      %631 = vmatpush1.msra.mxu0 0.0
      %632 = vmatprep.subr.mxu0 0.0
      %633 = vmatpush1.msra.mxu0 0.0
      %634 = vmatprep.subr.mxu0 0.0
      %635 = vmatpush1.msra.mxu0 0.0
      %636 = vmatprep.mubr.f32.mxu0 0.0
      %637 = vmatmul.mubr.f32.gmra.mrb[0].mxu0 %v521
      %v638 = vpop.f32.mrb[0].mxu0
      %v639 = vadd.f32 %v518, %v638
      %v640 = vpop.f32.mrb[0].mxu0
      %641 = vmatprep.mubr.f32.mxu0 0.0
      %642 = vmatmul.mubr.f32.gmra.mrb[0].mxu0 %v524
      %v643 = vpop.f32.mrb[0].mxu0
      %v644 = vadd.f32 %v518, %v643
      %v645 = vpop.f32.mrb[0].mxu0
      %646 = vmatprep.mubr.f32.mxu0 0.0
      %647 = vmatmul.mubr.f32.gmra.mrb[0].mxu0 %v527
      %v648 = vpop.f32.mrb[0].mxu0
      %v649 = vadd.f32 %v518, %v648
      %v650 = vpop.f32.mrb[0].mxu0
      %651 = vmatprep.mubr.f32.mxu0 0.0
      %652 = vmatmul.mubr.f32.gmra.mrb[0].mxu0 %v530
      %v653 = vpop.f32.mrb[0].mxu0
      %v654 = vadd.f32 %v518, %v653
      %v655 = vpop.f32.mrb[0].mxu0
      %656 = vmatprep.mubr.f32.mxu0 0.0
      %657 = vmatmul.mubr.f32.gmra.mrb[0].mxu0 %v533
      %v658 = vpop.f32.mrb[0].mxu0
      %v659 = vadd.f32 %v518, %v658
      %v660 = vpop.f32.mrb[0].mxu0
      %661 = vmatprep.mubr.f32.mxu0 0.0
      %662 = vmatmul.mubr.f32.gmra.mrb[0].mxu0 %v536
      %v663 = vpop.f32.mrb[0].mxu0
      %v664 = vadd.f32 %v518, %v663
      %v665 = vpop.f32.mrb[0].mxu0
      %666 = vmatprep.mubr.f32.mxu0 0.0
      %667 = vmatmul.mubr.f32.gmra.mrb[0].mxu0 %v539
      %v668 = vpop.f32.mrb[0].mxu0
      %v669 = vadd.f32 %v518, %v668
      %v670 = vpop.f32.mrb[0].mxu0
      %671 = vmatprep.mubr.f32.mxu0 0.0
      %672 = vmatmul.mubr.f32.gmra.mrb[0].mxu0 %v542
      %v673 = vpop.f32.mrb[0].mxu0
      %v674 = vadd.f32 %v518, %v673
      %v675 = vpop.f32.mrb[0].mxu0
      %676 = vmatprep.mubr.f32.mxu0 0.0
      %677 = vmatmul.mubr.f32.gmra.mrb[0].mxu0 %v545
      %v678 = vpop.f32.mrb[0].mxu0
      %v679 = vadd.f32 %v518, %v678
      %v680 = vpop.f32.mrb[0].mxu0
      %681 = vmatprep.mubr.f32.mxu0 0.0
      %682 = vmatmul.mubr.f32.gmra.mrb[0].mxu0 %v548
      %v683 = vpop.f32.mrb[0].mxu0
      %v684 = vadd.f32 %v518, %v683
      %v685 = vpop.f32.mrb[0].mxu0
      %686 = vmatprep.mubr.f32.mxu0 0.0
      %687 = vmatmul.mubr.f32.gmra.mrb[0].mxu0 %v551
      %v688 = vpop.f32.mrb[0].mxu0
      %v689 = vadd.f32 %v518, %v688
      %v690 = vpop.f32.mrb[0].mxu0
      %691 = vmatprep.mubr.f32.mxu0 0.0
      %692 = vmatmul.mubr.f32.gmra.mrb[0].mxu0 %v554
      %v693 = vpop.f32.mrb[0].mxu0
      %v694 = vadd.f32 %v518, %v693
      %v695 = vpop.f32.mrb[0].mxu0
      %696 = vmatprep.mubr.f32.mxu0 0.0
      %697 = vmatmul.mubr.f32.gmra.mrb[0].mxu0 %v557
      %v698 = vpop.f32.mrb[0].mxu0
      %v699 = vadd.f32 %v518, %v698
      %v700 = vpop.f32.mrb[0].mxu0
      %701 = vmatprep.mubr.f32.mxu0 0.0
      %702 = vmatmul.mubr.f32.gmra.mrb[0].mxu0 %v560
      %v703 = vpop.f32.mrb[0].mxu0
      %v704 = vadd.f32 %v518, %v703
      %v705 = vpop.f32.mrb[0].mxu0
      %706 = vmatprep.mubr.f32.mxu0 0.0
      %707 = vmatmul.mubr.f32.gmra.mrb[0].mxu0 %v563
      %v708 = vpop.f32.mrb[0].mxu0
      %v709 = vadd.f32 %v518, %v708
      %v710 = vpop.f32.mrb[0].mxu0
      %711 = vmatprep.mubr.f32.mxu0 0.0
      %712 = vmatmul.mubr.f32.gmra.mrb[0].mxu0 %v566
      %v713 = vpop.f32.mrb[0].mxu0
      %v714 = vadd.f32 %v518, %v713
      %v715 = vpop.f32.mrb[0].mxu0
      %716 = vdwg.mxu0
      %v717 = vmax.f32 %v639, 0.0
      %v718 = vmax.f32 %v644, 0.0
      %v719 = vmax.f32 %v649, 0.0
      %v720 = vmax.f32 %v654, 0.0
      %v721 = vmax.f32 %v659, 0.0
      %v722 = vmax.f32 %v664, 0.0
      %v723 = vmax.f32 %v669, 0.0
      %v724 = vmax.f32 %v674, 0.0
      %v725 = vmax.f32 %v679, 0.0
      %v726 = vmax.f32 %v684, 0.0
      %v727 = vmax.f32 %v689, 0.0
      %v728 = vmax.f32 %v694, 0.0
      %v729 = vmax.f32 %v699, 0.0
      %v730 = vmax.f32 %v704, 0.0
      %v731 = vmax.f32 %v709, 0.0
      %v732 = vmax.f32 %v714, 0.0
      %v733 = vlaneseq
      %v734 = vshrl.u32 %v733, 7
      %v735 = vsub.s32 0, %v734
      %v736 = vrot.slane %v172, %v735
      %vm737 = vcmask 261120
      %v739 = vsel %vm737, %v717, 0
      %v742 = vsel %vm737, %v718, 0
      %v745 = vsel %vm737, %v719, 0
      %v748 = vsel %vm737, %v720, 0
      %v751 = vsel %vm737, %v721, 0
      %v754 = vsel %vm737, %v722, 0
      %v757 = vsel %vm737, %v723, 0
      %v760 = vsel %vm737, %v724, 0
      %v763 = vsel %vm737, %v725, 0
      %v766 = vsel %vm737, %v726, 0
      %v769 = vsel %vm737, %v727, 0
      %v772 = vsel %vm737, %v728, 0
      %v775 = vsel %vm737, %v729, 0
      %v778 = vsel %vm737, %v730, 0
      %v781 = vsel %vm737, %v731, 0
      %v784 = vsel %vm737, %v732, 0
      %786 = vmatprep.subr.mxu0 0.0
      %787 = vmatpush1.msra.mxu0 %v168
      %788 = vmatprep.subr.mxu0 0.0
      %789 = vmatpush1.msra.mxu0 %v169
      %790 = vmatprep.subr.mxu0 0.0
      %791 = vmatpush1.msra.mxu0 %v170
      %792 = vmatprep.subr.mxu0 0.0
      %793 = vmatpush1.msra.mxu0 %v171
      %794 = vmatprep.subr.mxu0 0.0
      %795 = vmatpush1.msra.mxu0 0.0
      %796 = vmatprep.subr.mxu0 0.0
      %797 = vmatpush1.msra.mxu0 0.0
      %798 = vmatprep.subr.mxu0 0.0
      %799 = vmatpush1.msra.mxu0 0.0
      %800 = vmatprep.subr.mxu0 0.0
      %801 = vmatpush1.msra.mxu0 0.0
      %802 = vmatprep.subr.mxu0 0.0
      %803 = vmatpush1.msra.mxu0 0.0
      %804 = vmatprep.subr.mxu0 0.0
      %805 = vmatpush1.msra.mxu0 0.0
      %806 = vmatprep.subr.mxu0 0.0
      %807 = vmatpush1.msra.mxu0 0.0
      %808 = vmatprep.subr.mxu0 0.0
      %809 = vmatpush1.msra.mxu0 0.0
      %810 = vmatprep.subr.mxu0 0.0
      %811 = vmatpush1.msra.mxu0 0.0
      %812 = vmatprep.subr.mxu0 0.0
      %813 = vmatpush1.msra.mxu0 0.0
      %814 = vmatprep.subr.mxu0 0.0
      %815 = vmatpush1.msra.mxu0 0.0
      %816 = vmatprep.subr.mxu0 0.0
      %817 = vmatpush1.msra.mxu0 0.0
      %818 = vmatprep.subr.mxu0 0.0
      %819 = vmatpush1.msra.mxu0 0.0
      %820 = vmatprep.subr.mxu0 0.0
      %821 = vmatpush1.msra.mxu0 0.0
      %822 = vmatprep.subr.mxu0 0.0
      %823 = vmatpush1.msra.mxu0 0.0
      %824 = vmatprep.subr.mxu0 0.0
      %825 = vmatpush1.msra.mxu0 0.0
      %826 = vmatprep.subr.mxu0 0.0
      %827 = vmatpush1.msra.mxu0 0.0
      %828 = vmatprep.subr.mxu0 0.0
      %829 = vmatpush1.msra.mxu0 0.0
      %830 = vmatprep.subr.mxu0 0.0
      %831 = vmatpush1.msra.mxu0 0.0
      %832 = vmatprep.subr.mxu0 0.0
      %833 = vmatpush1.msra.mxu0 0.0
      %834 = vmatprep.subr.mxu0 0.0
      %835 = vmatpush1.msra.mxu0 0.0
      %836 = vmatprep.subr.mxu0 0.0
      %837 = vmatpush1.msra.mxu0 0.0
      %838 = vmatprep.subr.mxu0 0.0
      %839 = vmatpush1.msra.mxu0 0.0
      %840 = vmatprep.subr.mxu0 0.0
      %841 = vmatpush1.msra.mxu0 0.0
      %842 = vmatprep.subr.mxu0 0.0
      %843 = vmatpush1.msra.mxu0 0.0
      %844 = vmatprep.subr.mxu0 0.0
      %845 = vmatpush1.msra.mxu0 0.0
      %846 = vmatprep.subr.mxu0 0.0
      %847 = vmatpush1.msra.mxu0 0.0
      %848 = vmatprep.subr.mxu0 0.0
      %849 = vmatpush1.msra.mxu0 0.0
      %850 = vmatprep.mubr.f32.mxu0 0.0
      %851 = vmatmul.mubr.f32.gmra.mrb[0].mxu0 %v739
      %v852 = vpop.f32.mrb[0].mxu0
      %v853 = vadd.f32 %v736, %v852
      %v854 = vpop.f32.mrb[0].mxu0
      %855 = vmatprep.mubr.f32.mxu0 0.0
      %856 = vmatmul.mubr.f32.gmra.mrb[0].mxu0 %v742
      %v857 = vpop.f32.mrb[0].mxu0
      %v858 = vadd.f32 %v736, %v857
      %v859 = vpop.f32.mrb[0].mxu0
      %860 = vmatprep.mubr.f32.mxu0 0.0
      %861 = vmatmul.mubr.f32.gmra.mrb[0].mxu0 %v745
      %v862 = vpop.f32.mrb[0].mxu0
      %v863 = vadd.f32 %v736, %v862
      %v864 = vpop.f32.mrb[0].mxu0
      %865 = vmatprep.mubr.f32.mxu0 0.0
      %866 = vmatmul.mubr.f32.gmra.mrb[0].mxu0 %v748
      %v867 = vpop.f32.mrb[0].mxu0
      %v868 = vadd.f32 %v736, %v867
      %v869 = vpop.f32.mrb[0].mxu0
      %870 = vmatprep.mubr.f32.mxu0 0.0
      %871 = vmatmul.mubr.f32.gmra.mrb[0].mxu0 %v751
      %v872 = vpop.f32.mrb[0].mxu0
      %v873 = vadd.f32 %v736, %v872
      %v874 = vpop.f32.mrb[0].mxu0
      %875 = vmatprep.mubr.f32.mxu0 0.0
      %876 = vmatmul.mubr.f32.gmra.mrb[0].mxu0 %v754
      %v877 = vpop.f32.mrb[0].mxu0
      %v878 = vadd.f32 %v736, %v877
      %v879 = vpop.f32.mrb[0].mxu0
      %880 = vmatprep.mubr.f32.mxu0 0.0
      %881 = vmatmul.mubr.f32.gmra.mrb[0].mxu0 %v757
      %v882 = vpop.f32.mrb[0].mxu0
      %v883 = vadd.f32 %v736, %v882
      %v884 = vpop.f32.mrb[0].mxu0
      %885 = vmatprep.mubr.f32.mxu0 0.0
      %886 = vmatmul.mubr.f32.gmra.mrb[0].mxu0 %v760
      %v887 = vpop.f32.mrb[0].mxu0
      %v888 = vadd.f32 %v736, %v887
      %v889 = vpop.f32.mrb[0].mxu0
      %890 = vmatprep.mubr.f32.mxu0 0.0
      %891 = vmatmul.mubr.f32.gmra.mrb[0].mxu0 %v763
      %v892 = vpop.f32.mrb[0].mxu0
      %v893 = vadd.f32 %v736, %v892
      %v894 = vpop.f32.mrb[0].mxu0
      %895 = vmatprep.mubr.f32.mxu0 0.0
      %896 = vmatmul.mubr.f32.gmra.mrb[0].mxu0 %v766
      %v897 = vpop.f32.mrb[0].mxu0
      %v898 = vadd.f32 %v736, %v897
      %v899 = vpop.f32.mrb[0].mxu0
      %900 = vmatprep.mubr.f32.mxu0 0.0
      %901 = vmatmul.mubr.f32.gmra.mrb[0].mxu0 %v769
      %v902 = vpop.f32.mrb[0].mxu0
      %v903 = vadd.f32 %v736, %v902
      %v904 = vpop.f32.mrb[0].mxu0
      %905 = vmatprep.mubr.f32.mxu0 0.0
      %906 = vmatmul.mubr.f32.gmra.mrb[0].mxu0 %v772
      %v907 = vpop.f32.mrb[0].mxu0
      %v908 = vadd.f32 %v736, %v907
      %v909 = vpop.f32.mrb[0].mxu0
      %910 = vmatprep.mubr.f32.mxu0 0.0
      %911 = vmatmul.mubr.f32.gmra.mrb[0].mxu0 %v775
      %v912 = vpop.f32.mrb[0].mxu0
      %v913 = vadd.f32 %v736, %v912
      %v914 = vpop.f32.mrb[0].mxu0
      %915 = vmatprep.mubr.f32.mxu0 0.0
      %916 = vmatmul.mubr.f32.gmra.mrb[0].mxu0 %v778
      %v917 = vpop.f32.mrb[0].mxu0
      %v918 = vadd.f32 %v736, %v917
      %v919 = vpop.f32.mrb[0].mxu0
      %920 = vmatprep.mubr.f32.mxu0 0.0
      %921 = vmatmul.mubr.f32.gmra.mrb[0].mxu0 %v781
      %v922 = vpop.f32.mrb[0].mxu0
      %v923 = vadd.f32 %v736, %v922
      %v924 = vpop.f32.mrb[0].mxu0
      %925 = vmatprep.mubr.f32.mxu0 0.0
      %926 = vmatmul.mubr.f32.gmra.mrb[0].mxu0 %v784
      %v927 = vpop.f32.mrb[0].mxu0
      %v928 = vadd.f32 %v736, %v927
      %v929 = vpop.f32.mrb[0].mxu0
      %930 = vdwg.mxu0
      %931 = vst [vmem:[%s145] sm:$0xff] %v853
      %932 = vst [vmem:[%s145 + $0x8] sm:$0xff] %v858
      %933 = vst [vmem:[%s145 + $0x10] sm:$0xff] %v863
      %934 = vst [vmem:[%s145 + $0x18] sm:$0xff] %v868
      %935 = vst [vmem:[%s145 + $0x20] sm:$0xff] %v873
      %936 = vst [vmem:[%s145 + $0x28] sm:$0xff] %v878
      %937 = vst [vmem:[%s145 + $0x30] sm:$0xff] %v883
      %938 = vst [vmem:[%s145 + $0x38] sm:$0xff] %v888
      %939 = vst [vmem:[%s145 + $0x40] sm:$0xff] %v893
      %940 = vst [vmem:[%s145 + $0x48] sm:$0xff] %v898
      %941 = vst [vmem:[%s145 + $0x50] sm:$0xff] %v903
      %942 = vst [vmem:[%s145 + $0x58] sm:$0xff] %v908
      %943 = vst [vmem:[%s145 + $0x60] sm:$0xff] %v913
      %944 = vst [vmem:[%s145 + $0x68] sm:$0xff] %v918
      %945 = vst [vmem:[%s145 + $0x70] sm:$0xff] %v923
      %946 = vst [vmem:[%s145 + $0x78] sm:$0xff] %v928
      %s947 = smul.u32 16, %s13
      %p948 = scmp.lt.s32.totalorder %s947, 31
      %s949 = scalar_select %p948, %s947, 31
      %s950 = smul.addr %s949, 8
      %s951 = scalar_lea.vmem %s2, %s950
      // Predicated region
      $region29: #{stacking_forward.1} parent=27 // pred_check
        %p952 = pneg %p78
      $region30: #{stacking_forward.1} parent=27 // pred_check_branch
        %954 = sbr.rel (%p952) target = $region32
      $region31: #{stacking_forward.1} parent=27 // pred_region
        %s955 = smul.u32 16, %s13
      $region32: #{stacking_forward.1} parent=27 // pred_fallthru
        _
    $region28: #{stacking_forward.1} parent=5 // pred_fallthru
      _
    %p956 = scmp.le.s32.totalorder 2, %s8
    // Predicated region
    $region33: #{stacking_forward.1} parent=5 // pred_check
      %p957 = pneg %p956
    $region34: #{stacking_forward.1} parent=5 // pred_check_branch
      %959 = sbr.rel (%p957) target = $region36
    $region35: #{stacking_forward.1} parent=5 // pred_region
      %s960 = ssub.s32 %s8, 2
      // Predicated region
      $region37: #{stacking_forward.1} parent=35 // pred_check
        %p961 = pneg %p84
      $region38: #{stacking_forward.1} parent=35 // pred_check_branch
        %963 = sbr.rel (%p961) target = $region40
      $region39: #{stacking_forward.1} parent=35 // pred_region
        %s964 = smul.u32 16, %s14
        %p965 = scmp.lt.s32.totalorder %s964, 31
        %s966 = scalar_select %p965, %s964, 31
        %s967 = smul.addr %s966, 8
        %s968 = scalar_lea.vmem %s2, %s967
      $region40: #{stacking_forward.1} parent=35 // pred_fallthru
        _
    $region36: #{stacking_forward.1} parent=5 // pred_fallthru
      _
  $region6: #{stacking_forward.1} parent=0 // loop_footer
    %s12 = sadd.s32 1, %s8
  $region7: #{stacking_forward.1} parent=0 // loop_footer_branch
    %7 = sbr.rel target = $region3
  $region8: #{stacking_forward.1} parent=0 // loop_exit
    _

</llo_original>
